<compile_context>
chip_gen: v5e
topology: v5e:2x2
jax: 0.10.0
libtpu: 0.0.40
codegen_flags: <defaults>
</compile_context>

<pallas_src>
import functools
import math

import jax
import jax.numpy as jnp
from jax.experimental import pallas as pl
from jax.experimental.pallas import tpu as pltpu


# ---------------------------------------------------------------------------
# Kernel
# ---------------------------------------------------------------------------

def _separable_gather_kernel(oh_ref, ow_ref, x_ref, o_ref, *, precision):
    """One plane-block of the separable one-hot gather.

    oh_ref: (H_out, H)         one-hot row-selection matrix (constant, resident)
    ow_ref: (W, W_out)         one-hot col-selection matrix (constant, resident)
    x_ref : (bc, H, W)         block of input planes
    o_ref : (bc*H_out, W_out)  lane-dense flattened output block
    """
    bc, H, W = x_ref.shape
    H_out = oh_ref.shape[0]

    x = x_ref[...]
    oh = oh_ref[...]
    ow = ow_ref[...]

    # H-gather: batched one-hot matmul (pure row selection). The broadcast of
    # the tiny (H_out, H) matrix to the batch is cheap VPU work; the matrices
    # themselves were built wrapper-side, once.
    oh_b = jnp.broadcast_to(oh[None], (bc, H_out, H))
    gathered = jax.lax.dot_general(
        oh_b, x,
        dimension_numbers=(((2,), (1,)), ((0,), (0,))),
        preferred_element_type=jnp.float32,
        precision=precision,
    )                                                    # (bc, H_out, W), f32

    # W-gather: one flat MXU matmul. M = bc*H_out fills the MXU and the result
    # already has the lane-dense (bc*H_out, W_out) output layout, so the store
    # is an unmasked vst whenever W_out is lane-aligned.
    lhs = gathered.astype(ow.dtype).reshape(bc * H_out, W)
    out = jnp.dot(lhs, ow,
                  preferred_element_type=jnp.float32,
                  precision=precision)                   # (bc*H_out, W_out)
    o_ref[...] = out.astype(o_ref.dtype)


# ---------------------------------------------------------------------------
# Wrapper helpers
# ---------------------------------------------------------------------------

def _vmem_limit_bytes():
    """Per-generation scoped-VMEM request (v5e/v6e: 64 MiB, v7x: 32 MiB)."""
    cap = 64 << 20                       # conservative (v7x physical) fallback
    try:
        info = pltpu.get_tpu_info()
        cap = int(getattr(info, "vmem_capacity_bytes", cap))
    except Exception:
        pass
    return int(min(cap // 2, 64 << 20))


def _choose_plane_block(P, H, W, H_out, W_out, in_item, out_item, cd_item, budget):
    """Largest plane-block bc that fits the VMEM budget (double-buffering and
    in-kernel temporaries included), keeps >=2 grid steps, and keeps the output
    block's second-minor dim (bc*H_out) sublane aligned."""
    per_plane = (
        2 * H * W * in_item                 # x block, double-buffered
        + 2 * H_out * W_out * out_item      # out block, double-buffered
        + H_out * H * cd_item               # in-kernel broadcast of onehot_h
        + H_out * W * (4 + cd_item)         # f32 gathered intermediate + cast
        + H_out * W_out * 4                 # f32 result before output cast
    )
    fixed = 2 * (H_out * H + W * W_out) * cd_item + (2 << 20)
    max_bc = max(1, (budget - fixed) // max(1, per_plane))
    bc = int(min(P, max_bc, 512))
    if bc >= P and P > 1:
        # Never collapse to grid=(1,): keep >=2 steps for v7x's second
        # TensorCore and for input-DMA / compute / writeback overlap.
        bc = (P + 1) // 2
    # Output block second-minor dim (bc*H_out) must be a multiple of the
    # sublane pack (8 for 4-byte, 16 for 2-byte, 32 for 1-byte outputs).
    pack = max(8, 32 // max(1, min(out_item, 4)))
    step = pack // math.gcd(H_out, pack)
    bc = max(step, (bc // step) * step)
    return bc


# ---------------------------------------------------------------------------
# Wrapper
# ---------------------------------------------------------------------------

def unsafe_index_tensor(x, idx_h, idx_w):
    """aten._unsafe_index.Tensor(x, [None, None, idx_h[:, None], idx_w]) (NCHW)."""
    N, C, H, W = x.shape
    H_out = int(idx_h.shape[0])
    W_out = int(idx_w.shape[0])
    P = N * C
    out_dtype = x.dtype

    if x.dtype == jnp.bfloat16:
        compute_dtype = jnp.bfloat16
        precision = None                      # one-hot bf16 gather is exact
    else:
        # TODO(synk): integer inputs are exact through this f32 MXU path only
        # for |x| < 2**24; a select/DMA-gather path would be needed otherwise.
        compute_dtype = jnp.float32
        precision = jax.lax.Precision.HIGHEST  # keep f32 gather bit-exact on the MXU

    idx_h = idx_h.astype(jnp.int32)
    idx_w = idx_w.astype(jnp.int32)

    # One-hot selection matrices, built once wrapper-side (hoisted off the
    # in-kernel VPU); constant index_maps keep them VMEM-resident (they are
    # tiny, so double-buffering them costs essentially nothing).
    # TODO(synk): out-of-range / negative indices select nothing -> zeros
    # (acceptable for _unsafe_ semantics; aten.index would wrap negatives).
    onehot_h = (idx_h[:, None] == jnp.arange(H, dtype=jnp.int32)[None, :]
                ).astype(compute_dtype)                      # (H_out, H)
    onehot_w = (jnp.arange(W, dtype=jnp.int32)[:, None] == idx_w[None, :]
                ).astype(compute_dtype)                      # (W, W_out)

    in_item = jnp.dtype(compute_dtype).itemsize
    out_item = jnp.dtype(out_dtype).itemsize
    cd_item = in_item

    vmem_limit = _vmem_limit_bytes()
    bc = _choose_plane_block(P, H, W, H_out, W_out, in_item, out_item, cd_item,
                             budget=vmem_limit - (4 << 20))

    # Pad the plane count to a multiple of bc (cheaper than a per-plane path).
    x_p = x.reshape(P, H, W).astype(compute_dtype)
    n_blocks = -(-P // bc)
    P_pad = n_blocks * bc
    if P_pad != P:
        x_p = jnp.pad(x_p, ((0, P_pad - P), (0, 0), (0, 0)))

    flops = 2 * P_pad * H_out * W * (H + W_out)
    bytes_accessed = (P_pad * H * W * in_item
                      + (H_out * H + W * W_out) * cd_item
                      + P_pad * H_out * W_out * out_item)

    kernel = functools.partial(_separable_gather_kernel, precision=precision)
    out2d = pl.pallas_call(
        kernel,
        out_shape=jax.ShapeDtypeStruct((P_pad * H_out, W_out), out_dtype),
        grid_spec=pltpu.PrefetchScalarGridSpec(
            num_scalar_prefetch=0,
            grid=(n_blocks,),
            in_specs=[
                pl.BlockSpec((H_out, H), lambda i: (0, 0)),   # resident one-hot
                pl.BlockSpec((W, W_out), lambda i: (0, 0)),   # resident one-hot
                pl.BlockSpec((bc, H, W), lambda i: (i, 0, 0)),
            ],
            out_specs=pl.BlockSpec((bc * H_out, W_out), lambda i: (i, 0)),
        ),
        compiler_params=pltpu.CompilerParams(
            dimension_semantics=("parallel",),
            vmem_limit_bytes=int(vmem_limit)),
        cost_estimate=pl.CostEstimate(
            flops=int(flops), transcendentals=0,
            bytes_accessed=int(bytes_accessed)),
    )(onehot_h, onehot_w, x_p)

    return out2d[:P * H_out].reshape(N, C, H_out, W_out)


# ---------------------------------------------------------------------------
# Test
# ---------------------------------------------------------------------------

if __name__ == "__main__":
    key = jax.random.PRNGKey(0)
    kx, kh, kw, kx2, kh2, kw2 = jax.random.split(key, 6)

    # Primary config (upsample-style _unsafe_index at small shapes).
    N, C, H, W = 2, 4, 8, 16
    H_out, W_out = 16, 32
    x = jax.random.normal(kx, (N, C, H, W), dtype=jnp.float32)
    idx_h = jax.random.randint(kh, (H_out,), 0, H, dtype=jnp.int32)
    idx_w = jax.random.randint(kw, (W_out,), 0, W, dtype=jnp.int32)

    # Pure-JAX reference of aten._unsafe_index.Tensor(x, [None, None, idx_h[:,None], idx_w])
    ref = x[:, :, idx_h[:, None], idx_w[None, :]]
    out = jax.block_until_ready(unsafe_index_tensor(x, idx_h, idx_w))
    assert out.shape == (N, C, H_out, W_out)
    assert jnp.allclose(out, ref, atol=1e-6), "f32 path mismatch vs reference"

    # bf16 stays bf16 on the MXU; the one-hot gather is exact -> bitwise match.
    xb = x.astype(jnp.bfloat16)
    out_bf16 = jax.block_until_ready(unsafe_index_tensor(xb, idx_h, idx_w))
    ref_bf16 = xb[:, :, idx_h[:, None], idx_w[None, :]]
    assert bool((out_bf16 == ref_bf16).all()), "bf16 path mismatch vs reference"

    # Awkward shape: P not a multiple of the plane block, H_out not a multiple of 8
    # (exercises the padding path and the sublane-alignment logic).
    N2, C2, H2, W2 = 1, 3, 8, 16
    H2_out, W2_out = 12, 24
    x2 = jax.random.normal(kx2, (N2, C2, H2, W2), dtype=jnp.float32)
    ih2 = jax.random.randint(kh2, (H2_out,), 0, H2, dtype=jnp.int32)
    iw2 = jax.random.randint(kw2, (W2_out,), 0, W2, dtype=jnp.int32)
    ref2 = x2[:, :, ih2[:, None], iw2[None, :]]
    out2 = jax.block_until_ready(unsafe_index_tensor(x2, ih2, iw2))
    assert out2.shape == (N2, C2, H2_out, W2_out)
    assert jnp.allclose(out2, ref2, atol=1e-6), "padded path mismatch vs reference"

    print("KERNEL_OK")
</pallas_src>

<mosaic_0001>
module attributes {stable_mosaic.version = 11 : i64} {
  func.func @_separable_gather_kernel(%arg0: i32, %arg1: memref<16x8xf32, #tpu.memory_space<vmem>>, %arg2: memref<16x32xf32, #tpu.memory_space<vmem>>, %arg3: memref<4x8x16xf32, #tpu.memory_space<vmem>>, %arg4: memref<64x32xf32, #tpu.memory_space<vmem>>) attributes {dimension_semantics = [#tpu.dimension_semantics<parallel>], iteration_bounds = array<i64: 2>, scalar_prefetch = 0 : i64, scratch_operands = 0 : i64, tpu.core_type = #tpu.core_type<tc>, window_params = [{pipeline_mode = #tpu.pipeline_mode<synchronous>, transform_indices = @transform_0, window_bounds = array<i64: 16, 8>}, {pipeline_mode = #tpu.pipeline_mode<synchronous>, transform_indices = @transform_1, window_bounds = array<i64: 16, 32>}, {transform_indices = @transform_2, window_bounds = array<i64: 4, 8, 16>}, {transform_indices = @transform_3, window_bounds = array<i64: 64, 32>}]} {
    %c0 = arith.constant 0 : index
    %c0_0 = arith.constant 0 : index
    %c0_1 = arith.constant 0 : index
    %0 = vector.load %arg3[%c0, %c0_0, %c0_1] : memref<4x8x16xf32, #tpu.memory_space<vmem>>, vector<4x8x16xf32>
    %c0_2 = arith.constant 0 : index
    %c0_3 = arith.constant 0 : index
    %1 = vector.load %arg1[%c0_2, %c0_3] : memref<16x8xf32, #tpu.memory_space<vmem>>, vector<16x8xf32>
    %c0_4 = arith.constant 0 : index
    %c0_5 = arith.constant 0 : index
    %2 = vector.load %arg2[%c0_4, %c0_5] : memref<16x32xf32, #tpu.memory_space<vmem>>, vector<16x32xf32>
    %3 = vector.shape_cast %1 : vector<16x8xf32> to vector<1x16x8xf32>
    %4 = vector.shape_cast %3 : vector<1x16x8xf32> to vector<1x16x8xf32>
    %5 = vector.broadcast %4 : vector<1x16x8xf32> to vector<4x16x8xf32>
    %cst = arith.constant dense<0.000000e+00> : vector<4x16x16xf32>
    %6 = tpu.matmul %5, %0, %cst {dimension_numbers = #tpu.dot_dimension_numbers<[2], [1], [1], [2], [0, 0, 0, 1, 1, 2], [0], [0]>, precision = #tpu.contract_precision<fp32>} : vector<4x16x8xf32>, vector<4x8x16xf32>, vector<4x16x16xf32> -> vector<4x16x16xf32>
    %7 = vector.shape_cast %6 : vector<4x16x16xf32> to vector<64x16xf32>
    %cst_6 = arith.constant dense<0.000000e+00> : vector<64x32xf32>
    %8 = tpu.matmul %7, %2, %cst_6 {dimension_numbers = #tpu.dot_dimension_numbers<[1], [0], [0], [1], [0, 0, 1, 1], [], []>, precision = #tpu.contract_precision<fp32>} : vector<64x16xf32>, vector<16x32xf32>, vector<64x32xf32> -> vector<64x32xf32>
    %c0_7 = arith.constant 0 : index
    %c0_8 = arith.constant 0 : index
    %9 = vector.load %arg4[%c0_7, %c0_8] : memref<64x32xf32, #tpu.memory_space<vmem>>, vector<64x32xf32>
    tpu.vector_store %arg4[%c0_7, %c0_8], %8 {strides = array<i32>} : memref<64x32xf32, #tpu.memory_space<vmem>>, vector<64x32xf32>,
    return
  }
  func.func @transform_0(%arg0: i32) -> (i32, i32) {
    %c0_i32 = arith.constant 0 : i32
    %c0_i32_0 = arith.constant 0 : i32
    %c0_i32_1 = arith.constant 0 : i32
    return %c0_i32, %c0_i32_0 : i32, i32
  }
  func.func @transform_1(%arg0: i32) -> (i32, i32) {
    %c0_i32 = arith.constant 0 : i32
    %c0_i32_0 = arith.constant 0 : i32
    %c0_i32_1 = arith.constant 0 : i32
    return %c0_i32, %c0_i32_0 : i32, i32
  }
  func.func @transform_2(%arg0: i32) -> (i32, i32, i32) {
    %c0_i32 = arith.constant 0 : i32
    %c0_i32_0 = arith.constant 0 : i32
    %c0_i32_1 = arith.constant 0 : i32
    return %arg0, %c0_i32, %c0_i32_0 : i32, i32, i32
  }
  func.func @transform_3(%arg0: i32) -> (i32, i32) {
    %c0_i32 = arith.constant 0 : i32
    %c0_i32_0 = arith.constant 0 : i32
    return %arg0, %c0_i32 : i32, i32
  }
}

</mosaic_0001>

<llo_original>
// kernel: tpu_custom_call.1
$region0: #{tpu_custom_call.1}
  #allocation0 [shape = 'u32[]', space=smem, size = 0x4, offset = 0x4, fixed_abs, tag = 'smem constant byte address 0x4 - core index']
  #allocation1 [shape = 'u32[72,128]{1,0:T(1,128)}', space=vmem, size = 0x9000, scoped, tag = 'internal scratch']
  %s0 = inlined_call_operand.vmem [shape: f32[16,8], index: 0, kind: input, shape index: {}]
  %s1 = inlined_call_operand.vmem [shape: f32[16,32], index: 1, kind: input, shape index: {}]
  %s2 = inlined_call_operand.hbm [shape: f32[8,8,16], index: 2, kind: input, shape index: {}]
  %s3 = inlined_call_operand.vmem [shape: f32[128,32], index: 3, kind: output, shape index: {}]
  %s4 = sld [smem:[#allocation0]]
  $region49: #{tpu_custom_call.1} parent=0
    _
  %s6 = ssub.s32 1, %s4
  %s7 = scalar_select 0, %s6, %s4
  $region1: #{tpu_custom_call.1} parent=0
    #allocation2 [shape = 'u8[32768]{0}', space=vmem, size = 0x8000, scoped, tag = 'input window, operand 2']
    #allocation3 [shape = 's32[2]{0}', space=sflag, size = 0x8, scoped, tag = 'scoped memory for tpu_custom_call.1']
    %8 = vsyncpa [#allocation3], 0
    %s9 = scalar_lea.sflag [#allocation3], 1
    %10 = vsyncpa %s9, 0
    loop: start=0, step=1, limit=4
    $region2: #{tpu_custom_call.1} parent=1 // loop_pre_header
      _
    $region3: #{tpu_custom_call.1} parent=1 // loop_header
      %s12 = sphi 0, %s16
      %p13 = scmp.ge.s32.totalorder %s12, 4
      %s20 = sphi 0, %s20
      %s22 = sphi 0, %s20
      %s23 = sphi 0, %s22
      %s37 = sphi 0, %s23
      %s41 = sphi 0, %s41
      %s43 = sphi 0, %s41
      %s44 = sphi 0, %s43
      %s58 = sphi 0, %s44
      %s64 = sphi 0, %s66
      %s67 = sphi 0, %s64
      %s68 = sphi 0, %s67
      %s84 = sphi 0, %s68
      %s90 = sphi 0, %s92
      %s93 = sphi 0, %s90
      %s94 = sphi 0, %s93
      %s110 = sphi 0, %s94
    $region4: #{tpu_custom_call.1} parent=1 // loop_header_branch
      %15 = sbr.rel (%p13) target = $region8
    $region5: #{tpu_custom_call.1} parent=1 // loop_body
      %s17 = ssub.s32 %s12, 1
      %s18 = ssub.s32 %s12, 2
      %s19 = sadd.s32 %s12, 1
      %s21 = sadd.s32 %s20, 1
      %p24 = scmp.eq.s32.totalorder %s12, 1
      %p25 = scmp.ne.s32.totalorder %s20, %s22
      %p26 = scmp.eq.s32.totalorder %s12, 0
      %p27 = por %p25, %p26
      %p28 = scmp.ne.s32.totalorder %s20, %s22
      %p29 = scmp.eq.s32.totalorder %s17, 1
      %p30 = por %p28, %p29
      %p31 = scmp.ne.s32.totalorder %s22, %s23
      %p32 = scmp.eq.s32.totalorder %s17, 0
      %p33 = por %p31, %p32
      %p34 = scmp.ne.s32.totalorder %s22, %s23
      %p35 = scmp.eq.s32.totalorder %s18, 1
      %p36 = por %p34, %p35
      %p38 = scmp.ne.s32.totalorder %s23, %s37
      %p39 = scmp.eq.s32.totalorder %s18, 0
      %p40 = por %p38, %p39
      %s42 = sadd.s32 %s41, 1
      %p45 = scmp.eq.s32.totalorder %s12, 1
      %p46 = scmp.ne.s32.totalorder %s41, %s43
      %p47 = scmp.eq.s32.totalorder %s12, 0
      %p48 = por %p46, %p47
      %p49 = scmp.ne.s32.totalorder %s41, %s43
      %p50 = scmp.eq.s32.totalorder %s17, 1
      %p51 = por %p49, %p50
      %p52 = scmp.ne.s32.totalorder %s43, %s44
      %p53 = scmp.eq.s32.totalorder %s17, 0
      %p54 = por %p52, %p53
      %p55 = scmp.ne.s32.totalorder %s43, %s44
      %p56 = scmp.eq.s32.totalorder %s18, 1
      %p57 = por %p55, %p56
      %p59 = scmp.ne.s32.totalorder %s44, %s58
      %p60 = scmp.eq.s32.totalorder %s18, 0
      %p61 = por %p59, %p60
      %s62 = ssub.s32 %s12, %s19
      %p63 = scmp.eq.s32.totalorder %s62, 0
      %s65 = sadd.s32 %s64, 1
      %s66 = scalar_select %p63, %s64, %s65
      %p69 = pneg %p63
      %p70 = scmp.eq.s32.totalorder %s12, 1
      %p71 = por %p69, %p70
      %p72 = scmp.ne.s32.totalorder %s64, %s67
      %p73 = scmp.eq.s32.totalorder %s12, 0
      %p74 = por %p72, %p73
      %p75 = scmp.ne.s32.totalorder %s64, %s67
      %p76 = scmp.eq.s32.totalorder %s17, 1
      %p77 = por %p75, %p76
      %p78 = scmp.ne.s32.totalorder %s67, %s68
      %p79 = scmp.eq.s32.totalorder %s17, 0
      %p80 = por %p78, %p79
      %p81 = scmp.ne.s32.totalorder %s67, %s68
      %p82 = scmp.eq.s32.totalorder %s18, 1
      %p83 = por %p81, %p82
      %p85 = scmp.ne.s32.totalorder %s68, %s84
      %p86 = scmp.eq.s32.totalorder %s18, 0
      %p87 = por %p85, %p86
      %s88 = ssub.s32 %s12, %s19
      %p89 = scmp.eq.s32.totalorder %s88, 0
      %s91 = sadd.s32 %s90, 1
      %s92 = scalar_select %p89, %s90, %s91
      %p95 = pneg %p89
      %p96 = scmp.eq.s32.totalorder %s12, 1
      %p97 = por %p95, %p96
      %p98 = scmp.ne.s32.totalorder %s90, %s93
      %p99 = scmp.eq.s32.totalorder %s12, 0
      %p100 = por %p98, %p99
      %p101 = scmp.ne.s32.totalorder %s90, %s93
      %p102 = scmp.eq.s32.totalorder %s17, 1
      %p103 = por %p101, %p102
      %p104 = scmp.ne.s32.totalorder %s93, %s94
      %p105 = scmp.eq.s32.totalorder %s17, 0
      %p106 = por %p104, %p105
      %p107 = scmp.ne.s32.totalorder %s93, %s94
      %p108 = scmp.eq.s32.totalorder %s18, 1
      %p109 = por %p107, %p108
      %p111 = scmp.ne.s32.totalorder %s94, %s110
      %p112 = scmp.eq.s32.totalorder %s18, 0
      %p113 = por %p111, %p112
      %p114 = scmp.le.s32.totalorder 1, %s12
      %p115 = scmp.lt.s32.totalorder %s12, 3
      %p116 = pnand %p114, %p115
      %p117 = pneg %p116
      // Predicated region
      $region9: #{tpu_custom_call.1} parent=5 // pred_check
        _
      $region10: #{tpu_custom_call.1} parent=5 // pred_check_branch
        %119 = sbr.rel (%p116) target = $region12
      $region11: #{tpu_custom_call.1} parent=5 // pred_region
        %s120 = ssub.s32 %s12, 1
        // Predicated region
        $region13: #{tpu_custom_call.1} parent=11 // pred_check
          %p121 = pneg %p33
        $region14: #{tpu_custom_call.1} parent=11 // pred_check_branch
          %123 = sbr.rel (%p121) target = $region16
        $region15: #{tpu_custom_call.1} parent=11 // pred_region
          _
        $region16: #{tpu_custom_call.1} parent=11 // pred_fallthru
          _
        // Predicated region
        $region17: #{tpu_custom_call.1} parent=11 // pred_check
          %p124 = pneg %p54
        $region18: #{tpu_custom_call.1} parent=11 // pred_check_branch
          %126 = sbr.rel (%p124) target = $region20
        $region19: #{tpu_custom_call.1} parent=11 // pred_region
          _
        $region20: #{tpu_custom_call.1} parent=11 // pred_fallthru
          _
      $region12: #{tpu_custom_call.1} parent=5 // pred_fallthru
        _
      %p127 = scmp.lt.s32.totalorder %s12, 2
      // Predicated region
      $region21: #{tpu_custom_call.1} parent=5 // pred_check
        %p128 = pneg %p127
      $region22: #{tpu_custom_call.1} parent=5 // pred_check_branch
        %130 = sbr.rel (%p128) target = $region24
      $region23: #{tpu_custom_call.1} parent=5 // pred_region
        // Predicated region
        $region25: #{tpu_custom_call.1} parent=23 // pred_check
          %p131 = pneg %p74
        $region26: #{tpu_custom_call.1} parent=23 // pred_check_branch
          %133 = sbr.rel (%p131) target = $region28
        $region27: #{tpu_custom_call.1} parent=23 // pred_region
          %s134 = sand.u32 %s64, 1
          %s135 = scalar_lea.sflag [#allocation3], %s134
          %s136 = sand.u32 %s64, 1
          %s137 = smul.addr %s136, 32
          %s138 = scalar_lea.vmem [#allocation2], %s137
          %s139 = smul.u32 4, %s12
          %141 = vsyncadd %s135, 0
          %s142 = smul.addr %s139, 8
          %s143 = scalar_lea.hbm %s2, %s142
          %s144 = sshll.u32 %s143, 4
          %s145 = int_to_ptr.hbm [resolvable:$true] %s144
          %s146 = sshll.u32 %s138, 4
          %s147 = int_to_ptr.vmem [resolvable:$true] %s146
          %152 = dma.hbm_to_vmem [thread:$0]  %s145, 512, %s147, %s135, 128, 128, 8
        $region28: #{tpu_custom_call.1} parent=23 // pred_fallthru
          _
      $region24: #{tpu_custom_call.1} parent=5 // pred_fallthru
        _
      %p153 = scmp.le.s32.totalorder 1, %s12
      %p154 = scmp.lt.s32.totalorder %s12, 3
      %p155 = pnand %p153, %p154
      %p156 = pneg %p155
      // Predicated region
      $region29: #{tpu_custom_call.1} parent=5 // pred_check
        _
      $region30: #{tpu_custom_call.1} parent=5 // pred_check_branch
        %158 = sbr.rel (%p155) target = $region32
      $region31: #{tpu_custom_call.1} parent=5 // pred_region
        %s159 = ssub.s32 %s12, 1
        %s160 = sand.u32 %s67, 1
        %s161 = scalar_lea.sflag [#allocation3], %s160
        %s162 = sand.u32 %s67, 1
        %s163 = smul.addr %s162, 32
        %s164 = scalar_lea.vmem [#allocation2], %s163
        // Predicated region
        $region33: #{tpu_custom_call.1} parent=31 // pred_check
          %p165 = pneg %p80
        $region34: #{tpu_custom_call.1} parent=31 // pred_check_branch
          %167 = sbr.rel (%p165) target = $region36
        $region35: #{tpu_custom_call.1} parent=31 // pred_region
          %169 = dma.done %s161, 512
        $region36: #{tpu_custom_call.1} parent=31 // pred_fallthru
          _
        %p170 = pneg %p33
        %p171 = pneg %p30
        %p172 = pneg %p54
        %p173 = pneg %p51
        %s174 = sand.u32 %s67, 1
        %s175 = scalar_lea.sflag [#allocation3], %s174
        %s176 = sand.u32 %s67, 1
        %s177 = smul.addr %s176, 32
        %s178 = scalar_lea.vmem [#allocation2], %s177
        %p179 = pneg %p80
        %p180 = pneg %p77
        %p181 = pneg %p106
        %p182 = pneg %p103
        %s183 = smul.u32 8, %s17
        %p184 = scmp.lt.s32.totalorder %s183, 15
        %s185 = scalar_select %p184, %s183, 15
        %s186 = smul.addr %s185, 8
        %s187 = scalar_lea.vmem %s3, %s186
        %s188 = smul.u32 4, %s17
        %s189 = smul.u32 8, %s17
        %p190 = scmp.lt.s32.totalorder %s189, 15
        %s191 = scalar_select %p190, %s189, 15
        %s192 = smul.addr %s191, 8
        %s193 = scalar_lea.vmem %s3, %s192
        %s194 = smul.u32 8, %s17
        %v195 = vld [vmem:[%s164] sm:$0xff]
        %v196 = vld [vmem:[%s164 + $0x8] sm:$0xff]
        %v197 = vld [vmem:[%s164 + $0x10] sm:$0xff]
        %v198 = vld [vmem:[%s164 + $0x18] sm:$0xff]
        %v199 = vld [vmem:[%s0] sm:$0xff]
        %v200 = vld [vmem:[%s0 + $0x8] sm:$0xff]
        %v201 = vld [vmem:[%s1] sm:$0xff]
        %v202 = vld [vmem:[%s1 + $0x8] sm:$0xff]
        %vm203 = vcmask 64512
        %v205 = vsel %vm203, %v199, 0
        %v208 = vsel %vm203, %v200, 0
        %210 = vmatpush.msra.mxu0 0.0
        %211 = vmatpush.msra.mxu0 0.0
        %212 = vmatpush.msra.mxu0 0.0
        %213 = vmatpush.msra.mxu0 0.0
        %214 = vmatpush.msra.mxu0 0.0
        %215 = vmatpush.msra.mxu0 0.0
        %216 = vmatpush.msra.mxu0 0.0
        %217 = vmatpush.msra.mxu0 0.0
        %218 = vmatpush.msra.mxu0 0.0
        %219 = vmatpush.msra.mxu0 0.0
        %220 = vmatpush.msra.mxu0 0.0
        %221 = vmatpush.msra.mxu0 0.0
        %222 = vmatpush.msra.mxu0 0.0
        %223 = vmatpush.msra.mxu0 0.0
        %224 = vmatpush.msra.mxu0 0.0
        %v225 = vand.u32 %v195, 4294901760
        %226 = vmatpush.msra.mxu0 %v225
        %v227 = vand.u32 %v205, 4294901760
        %v228 = vsub.f32 %v205, %v227
        %v229 = vand.u32 %v228, 4294901760
        %v230 = vsub.f32 %v228, %v229
        %v231 = vand.u32 %v230, 4294901760
        %232 = vmatmul.f32.gmra.mxu0 %v231
        %v233 = vpop.f32.mrf.mxu0
        %v234 = vadd.f32 0.0, %v233
        %v235 = vand.u32 %v208, 4294901760
        %v236 = vsub.f32 %v208, %v235
        %v237 = vand.u32 %v236, 4294901760
        %v238 = vsub.f32 %v236, %v237
        %v239 = vand.u32 %v238, 4294901760
        %240 = vmatmul.f32.gmra.mxu0 %v239
        %v241 = vpop.f32.mrf.mxu0
        %v242 = vadd.f32 0.0, %v241
        %243 = vdwg.mxu0
        %244 = vmatpush.msra.mxu0 0.0
        %245 = vmatpush.msra.mxu0 0.0
        %246 = vmatpush.msra.mxu0 0.0
        %247 = vmatpush.msra.mxu0 0.0
        %248 = vmatpush.msra.mxu0 0.0
        %249 = vmatpush.msra.mxu0 0.0
        %250 = vmatpush.msra.mxu0 0.0
        %251 = vmatpush.msra.mxu0 0.0
        %252 = vmatpush.msra.mxu0 0.0
        %253 = vmatpush.msra.mxu0 0.0
        %254 = vmatpush.msra.mxu0 0.0
        %255 = vmatpush.msra.mxu0 0.0
        %256 = vmatpush.msra.mxu0 0.0
        %257 = vmatpush.msra.mxu0 0.0
        %258 = vmatpush.msra.mxu0 0.0
        %v259 = vand.u32 %v195, 4294901760
        %v260 = vsub.f32 %v195, %v259
        %v261 = vand.u32 %v260, 4294901760
        %v262 = vsub.f32 %v260, %v261
        %v263 = vand.u32 %v262, 4294901760
        %264 = vmatpush.msra.mxu0 %v263
        %v265 = vand.u32 %v205, 4294901760
        %266 = vmatmul.f32.gmra.mxu0 %v265
        %v267 = vpop.f32.mrf.mxu0
        %v268 = vadd.f32 %v234, %v267
        %v269 = vand.u32 %v208, 4294901760
        %270 = vmatmul.f32.gmra.mxu0 %v269
        %v271 = vpop.f32.mrf.mxu0
        %v272 = vadd.f32 %v242, %v271
        %273 = vdwg.mxu0
        %274 = vmatpush.msra.mxu0 0.0
        %275 = vmatpush.msra.mxu0 0.0
        %276 = vmatpush.msra.mxu0 0.0
        %277 = vmatpush.msra.mxu0 0.0
        %278 = vmatpush.msra.mxu0 0.0
        %279 = vmatpush.msra.mxu0 0.0
        %280 = vmatpush.msra.mxu0 0.0
        %281 = vmatpush.msra.mxu0 0.0
        %282 = vmatpush.msra.mxu0 0.0
        %283 = vmatpush.msra.mxu0 0.0
        %284 = vmatpush.msra.mxu0 0.0
        %285 = vmatpush.msra.mxu0 0.0
        %286 = vmatpush.msra.mxu0 0.0
        %287 = vmatpush.msra.mxu0 0.0
        %288 = vmatpush.msra.mxu0 0.0
        %v289 = vand.u32 %v195, 4294901760
        %v290 = vsub.f32 %v195, %v289
        %291 = vmatpush.msra.mxu0 %v290
        %v292 = vand.u32 %v205, 4294901760
        %v293 = vsub.f32 %v205, %v292
        %294 = vmatmul.f32.gmra.mxu0 %v293
        %v295 = vpop.f32.mrf.mxu0
        %v296 = vadd.f32 %v268, %v295
        %v297 = vand.u32 %v208, 4294901760
        %v298 = vsub.f32 %v208, %v297
        %299 = vmatmul.f32.gmra.mxu0 %v298
        %v300 = vpop.f32.mrf.mxu0
        %v301 = vadd.f32 %v272, %v300
        %302 = vdwg.mxu0
        %303 = vmatpush.msra.mxu0 0.0
        %304 = vmatpush.msra.mxu0 0.0
        %305 = vmatpush.msra.mxu0 0.0
        %306 = vmatpush.msra.mxu0 0.0
        %307 = vmatpush.msra.mxu0 0.0
        %308 = vmatpush.msra.mxu0 0.0
        %309 = vmatpush.msra.mxu0 0.0
        %310 = vmatpush.msra.mxu0 0.0
        %311 = vmatpush.msra.mxu0 0.0
        %312 = vmatpush.msra.mxu0 0.0
        %313 = vmatpush.msra.mxu0 0.0
        %314 = vmatpush.msra.mxu0 0.0
        %315 = vmatpush.msra.mxu0 0.0
        %316 = vmatpush.msra.mxu0 0.0
        %317 = vmatpush.msra.mxu0 0.0
        %v318 = vand.u32 %v195, 4294901760
        %319 = vmatpush.msra.mxu0 %v318
        %v320 = vand.u32 %v205, 4294901760
        %v321 = vsub.f32 %v205, %v320
        %v322 = vand.u32 %v321, 4294901760
        %323 = vmatmul.f32.gmra.mxu0 %v322
        %v324 = vpop.f32.mrf.mxu0
        %v325 = vadd.f32 %v296, %v324
        %v326 = vand.u32 %v208, 4294901760
        %v327 = vsub.f32 %v208, %v326
        %v328 = vand.u32 %v327, 4294901760
        %329 = vmatmul.f32.gmra.mxu0 %v328
        %v330 = vpop.f32.mrf.mxu0
        %v331 = vadd.f32 %v301, %v330
        %332 = vdwg.mxu0
        %333 = vmatpush.msra.mxu0 0.0
        %334 = vmatpush.msra.mxu0 0.0
        %335 = vmatpush.msra.mxu0 0.0
        %336 = vmatpush.msra.mxu0 0.0
        %337 = vmatpush.msra.mxu0 0.0
        %338 = vmatpush.msra.mxu0 0.0
        %339 = vmatpush.msra.mxu0 0.0
        %340 = vmatpush.msra.mxu0 0.0
        %341 = vmatpush.msra.mxu0 0.0
        %342 = vmatpush.msra.mxu0 0.0
        %343 = vmatpush.msra.mxu0 0.0
        %344 = vmatpush.msra.mxu0 0.0
        %345 = vmatpush.msra.mxu0 0.0
        %346 = vmatpush.msra.mxu0 0.0
        %347 = vmatpush.msra.mxu0 0.0
        %v348 = vand.u32 %v195, 4294901760
        %v349 = vsub.f32 %v195, %v348
        %v350 = vand.u32 %v349, 4294901760
        %351 = vmatpush.msra.mxu0 %v350
        %v352 = vand.u32 %v205, 4294901760
        %353 = vmatmul.f32.gmra.mxu0 %v352
        %v354 = vpop.f32.mrf.mxu0
        %v355 = vadd.f32 %v325, %v354
        %v356 = vand.u32 %v208, 4294901760
        %357 = vmatmul.f32.gmra.mxu0 %v356
        %v358 = vpop.f32.mrf.mxu0
        %v359 = vadd.f32 %v331, %v358
        %360 = vdwg.mxu0
        %361 = vmatpush.msra.mxu0 0.0
        %362 = vmatpush.msra.mxu0 0.0
        %363 = vmatpush.msra.mxu0 0.0
        %364 = vmatpush.msra.mxu0 0.0
        %365 = vmatpush.msra.mxu0 0.0
        %366 = vmatpush.msra.mxu0 0.0
        %367 = vmatpush.msra.mxu0 0.0
        %368 = vmatpush.msra.mxu0 0.0
        %369 = vmatpush.msra.mxu0 0.0
        %370 = vmatpush.msra.mxu0 0.0
        %371 = vmatpush.msra.mxu0 0.0
        %372 = vmatpush.msra.mxu0 0.0
        %373 = vmatpush.msra.mxu0 0.0
        %374 = vmatpush.msra.mxu0 0.0
        %375 = vmatpush.msra.mxu0 0.0
        %v376 = vand.u32 %v195, 4294901760
        %377 = vmatpush.msra.mxu0 %v376
        %v378 = vand.u32 %v205, 4294901760
        %379 = vmatmul.f32.gmra.mxu0 %v378
        %v380 = vpop.f32.mrf.mxu0
        %v381 = vadd.f32 %v355, %v380
        %v382 = vand.u32 %v208, 4294901760
        %383 = vmatmul.f32.gmra.mxu0 %v382
        %v384 = vpop.f32.mrf.mxu0
        %v385 = vadd.f32 %v359, %v384
        %386 = vdwg.mxu0
        %387 = vmatpush.msra.mxu0 0.0
        %388 = vmatpush.msra.mxu0 0.0
        %389 = vmatpush.msra.mxu0 0.0
        %390 = vmatpush.msra.mxu0 0.0
        %391 = vmatpush.msra.mxu0 0.0
        %392 = vmatpush.msra.mxu0 0.0
        %393 = vmatpush.msra.mxu0 0.0
        %394 = vmatpush.msra.mxu0 0.0
        %395 = vmatpush.msra.mxu0 0.0
        %396 = vmatpush.msra.mxu0 0.0
        %397 = vmatpush.msra.mxu0 0.0
        %398 = vmatpush.msra.mxu0 0.0
        %399 = vmatpush.msra.mxu0 0.0
        %400 = vmatpush.msra.mxu0 0.0
        %401 = vmatpush.msra.mxu0 0.0
        %v402 = vand.u32 %v196, 4294901760
        %403 = vmatpush.msra.mxu0 %v402
        %v404 = vand.u32 %v205, 4294901760
        %v405 = vsub.f32 %v205, %v404
        %v406 = vand.u32 %v405, 4294901760
        %v407 = vsub.f32 %v405, %v406
        %v408 = vand.u32 %v407, 4294901760
        %409 = vmatmul.f32.gmra.mxu0 %v408
        %v410 = vpop.f32.mrf.mxu0
        %v411 = vadd.f32 0.0, %v410
        %v412 = vand.u32 %v208, 4294901760
        %v413 = vsub.f32 %v208, %v412
        %v414 = vand.u32 %v413, 4294901760
        %v415 = vsub.f32 %v413, %v414
        %v416 = vand.u32 %v415, 4294901760
        %417 = vmatmul.f32.gmra.mxu0 %v416
        %v418 = vpop.f32.mrf.mxu0
        %v419 = vadd.f32 0.0, %v418
        %420 = vdwg.mxu0
        %421 = vmatpush.msra.mxu0 0.0
        %422 = vmatpush.msra.mxu0 0.0
        %423 = vmatpush.msra.mxu0 0.0
        %424 = vmatpush.msra.mxu0 0.0
        %425 = vmatpush.msra.mxu0 0.0
        %426 = vmatpush.msra.mxu0 0.0
        %427 = vmatpush.msra.mxu0 0.0
        %428 = vmatpush.msra.mxu0 0.0
        %429 = vmatpush.msra.mxu0 0.0
        %430 = vmatpush.msra.mxu0 0.0
        %431 = vmatpush.msra.mxu0 0.0
        %432 = vmatpush.msra.mxu0 0.0
        %433 = vmatpush.msra.mxu0 0.0
        %434 = vmatpush.msra.mxu0 0.0
        %435 = vmatpush.msra.mxu0 0.0
        %v436 = vand.u32 %v196, 4294901760
        %v437 = vsub.f32 %v196, %v436
        %v438 = vand.u32 %v437, 4294901760
        %v439 = vsub.f32 %v437, %v438
        %v440 = vand.u32 %v439, 4294901760
        %441 = vmatpush.msra.mxu0 %v440
        %v442 = vand.u32 %v205, 4294901760
        %443 = vmatmul.f32.gmra.mxu0 %v442
        %v444 = vpop.f32.mrf.mxu0
        %v445 = vadd.f32 %v411, %v444
        %v446 = vand.u32 %v208, 4294901760
        %447 = vmatmul.f32.gmra.mxu0 %v446
        %v448 = vpop.f32.mrf.mxu0
        %v449 = vadd.f32 %v419, %v448
        %450 = vdwg.mxu0
        %451 = vmatpush.msra.mxu0 0.0
        %452 = vmatpush.msra.mxu0 0.0
        %453 = vmatpush.msra.mxu0 0.0
        %454 = vmatpush.msra.mxu0 0.0
        %455 = vmatpush.msra.mxu0 0.0
        %456 = vmatpush.msra.mxu0 0.0
        %457 = vmatpush.msra.mxu0 0.0
        %458 = vmatpush.msra.mxu0 0.0
        %459 = vmatpush.msra.mxu0 0.0
        %460 = vmatpush.msra.mxu0 0.0
        %461 = vmatpush.msra.mxu0 0.0
        %462 = vmatpush.msra.mxu0 0.0
        %463 = vmatpush.msra.mxu0 0.0
        %464 = vmatpush.msra.mxu0 0.0
        %465 = vmatpush.msra.mxu0 0.0
        %v466 = vand.u32 %v196, 4294901760
        %v467 = vsub.f32 %v196, %v466
        %468 = vmatpush.msra.mxu0 %v467
        %v469 = vand.u32 %v205, 4294901760
        %v470 = vsub.f32 %v205, %v469
        %471 = vmatmul.f32.gmra.mxu0 %v470
        %v472 = vpop.f32.mrf.mxu0
        %v473 = vadd.f32 %v445, %v472
        %v474 = vand.u32 %v208, 4294901760
        %v475 = vsub.f32 %v208, %v474
        %476 = vmatmul.f32.gmra.mxu0 %v475
        %v477 = vpop.f32.mrf.mxu0
        %v478 = vadd.f32 %v449, %v477
        %479 = vdwg.mxu0
        %480 = vmatpush.msra.mxu0 0.0
        %481 = vmatpush.msra.mxu0 0.0
        %482 = vmatpush.msra.mxu0 0.0
        %483 = vmatpush.msra.mxu0 0.0
        %484 = vmatpush.msra.mxu0 0.0
        %485 = vmatpush.msra.mxu0 0.0
        %486 = vmatpush.msra.mxu0 0.0
        %487 = vmatpush.msra.mxu0 0.0
        %488 = vmatpush.msra.mxu0 0.0
        %489 = vmatpush.msra.mxu0 0.0
        %490 = vmatpush.msra.mxu0 0.0
        %491 = vmatpush.msra.mxu0 0.0
        %492 = vmatpush.msra.mxu0 0.0
        %493 = vmatpush.msra.mxu0 0.0
        %494 = vmatpush.msra.mxu0 0.0
        %v495 = vand.u32 %v196, 4294901760
        %496 = vmatpush.msra.mxu0 %v495
        %v497 = vand.u32 %v205, 4294901760
        %v498 = vsub.f32 %v205, %v497
        %v499 = vand.u32 %v498, 4294901760
        %500 = vmatmul.f32.gmra.mxu0 %v499
        %v501 = vpop.f32.mrf.mxu0
        %v502 = vadd.f32 %v473, %v501
        %v503 = vand.u32 %v208, 4294901760
        %v504 = vsub.f32 %v208, %v503
        %v505 = vand.u32 %v504, 4294901760
        %506 = vmatmul.f32.gmra.mxu0 %v505
        %v507 = vpop.f32.mrf.mxu0
        %v508 = vadd.f32 %v478, %v507
        %509 = vdwg.mxu0
        %510 = vmatpush.msra.mxu0 0.0
        %511 = vmatpush.msra.mxu0 0.0
        %512 = vmatpush.msra.mxu0 0.0
        %513 = vmatpush.msra.mxu0 0.0
        %514 = vmatpush.msra.mxu0 0.0
        %515 = vmatpush.msra.mxu0 0.0
        %516 = vmatpush.msra.mxu0 0.0
        %517 = vmatpush.msra.mxu0 0.0
        %518 = vmatpush.msra.mxu0 0.0
        %519 = vmatpush.msra.mxu0 0.0
        %520 = vmatpush.msra.mxu0 0.0
        %521 = vmatpush.msra.mxu0 0.0
        %522 = vmatpush.msra.mxu0 0.0
        %523 = vmatpush.msra.mxu0 0.0
        %524 = vmatpush.msra.mxu0 0.0
        %v525 = vand.u32 %v196, 4294901760
        %v526 = vsub.f32 %v196, %v525
        %v527 = vand.u32 %v526, 4294901760
        %528 = vmatpush.msra.mxu0 %v527
        %v529 = vand.u32 %v205, 4294901760
        %530 = vmatmul.f32.gmra.mxu0 %v529
        %v531 = vpop.f32.mrf.mxu0
        %v532 = vadd.f32 %v502, %v531
        %v533 = vand.u32 %v208, 4294901760
        %534 = vmatmul.f32.gmra.mxu0 %v533
        %v535 = vpop.f32.mrf.mxu0
        %v536 = vadd.f32 %v508, %v535
        %537 = vdwg.mxu0
        %538 = vmatpush.msra.mxu0 0.0
        %539 = vmatpush.msra.mxu0 0.0
        %540 = vmatpush.msra.mxu0 0.0
        %541 = vmatpush.msra.mxu0 0.0
        %542 = vmatpush.msra.mxu0 0.0
        %543 = vmatpush.msra.mxu0 0.0
        %544 = vmatpush.msra.mxu0 0.0
        %545 = vmatpush.msra.mxu0 0.0
        %546 = vmatpush.msra.mxu0 0.0
        %547 = vmatpush.msra.mxu0 0.0
        %548 = vmatpush.msra.mxu0 0.0
        %549 = vmatpush.msra.mxu0 0.0
        %550 = vmatpush.msra.mxu0 0.0
        %551 = vmatpush.msra.mxu0 0.0
        %552 = vmatpush.msra.mxu0 0.0
        %v553 = vand.u32 %v196, 4294901760
        %554 = vmatpush.msra.mxu0 %v553
        %v555 = vand.u32 %v205, 4294901760
        %556 = vmatmul.f32.gmra.mxu0 %v555
        %v557 = vpop.f32.mrf.mxu0
        %v558 = vadd.f32 %v532, %v557
        %v559 = vand.u32 %v208, 4294901760
        %560 = vmatmul.f32.gmra.mxu0 %v559
        %v561 = vpop.f32.mrf.mxu0
        %v562 = vadd.f32 %v536, %v561
        %563 = vdwg.mxu0
        %564 = vmatpush.msra.mxu0 0.0
        %565 = vmatpush.msra.mxu0 0.0
        %566 = vmatpush.msra.mxu0 0.0
        %567 = vmatpush.msra.mxu0 0.0
        %568 = vmatpush.msra.mxu0 0.0
        %569 = vmatpush.msra.mxu0 0.0
        %570 = vmatpush.msra.mxu0 0.0
        %571 = vmatpush.msra.mxu0 0.0
        %572 = vmatpush.msra.mxu0 0.0
        %573 = vmatpush.msra.mxu0 0.0
        %574 = vmatpush.msra.mxu0 0.0
        %575 = vmatpush.msra.mxu0 0.0
        %576 = vmatpush.msra.mxu0 0.0
        %577 = vmatpush.msra.mxu0 0.0
        %578 = vmatpush.msra.mxu0 0.0
        %v579 = vand.u32 %v197, 4294901760
        %580 = vmatpush.msra.mxu0 %v579
        %v581 = vand.u32 %v205, 4294901760
        %v582 = vsub.f32 %v205, %v581
        %v583 = vand.u32 %v582, 4294901760
        %v584 = vsub.f32 %v582, %v583
        %v585 = vand.u32 %v584, 4294901760
        %586 = vmatmul.f32.gmra.mxu0 %v585
        %v587 = vpop.f32.mrf.mxu0
        %v588 = vadd.f32 0.0, %v587
        %v589 = vand.u32 %v208, 4294901760
        %v590 = vsub.f32 %v208, %v589
        %v591 = vand.u32 %v590, 4294901760
        %v592 = vsub.f32 %v590, %v591
        %v593 = vand.u32 %v592, 4294901760
        %594 = vmatmul.f32.gmra.mxu0 %v593
        %v595 = vpop.f32.mrf.mxu0
        %v596 = vadd.f32 0.0, %v595
        %597 = vdwg.mxu0
        %598 = vmatpush.msra.mxu0 0.0
        %599 = vmatpush.msra.mxu0 0.0
        %600 = vmatpush.msra.mxu0 0.0
        %601 = vmatpush.msra.mxu0 0.0
        %602 = vmatpush.msra.mxu0 0.0
        %603 = vmatpush.msra.mxu0 0.0
        %604 = vmatpush.msra.mxu0 0.0
        %605 = vmatpush.msra.mxu0 0.0
        %606 = vmatpush.msra.mxu0 0.0
        %607 = vmatpush.msra.mxu0 0.0
        %608 = vmatpush.msra.mxu0 0.0
        %609 = vmatpush.msra.mxu0 0.0
        %610 = vmatpush.msra.mxu0 0.0
        %611 = vmatpush.msra.mxu0 0.0
        %612 = vmatpush.msra.mxu0 0.0
        %v613 = vand.u32 %v197, 4294901760
        %v614 = vsub.f32 %v197, %v613
        %v615 = vand.u32 %v614, 4294901760
        %v616 = vsub.f32 %v614, %v615
        %v617 = vand.u32 %v616, 4294901760
        %618 = vmatpush.msra.mxu0 %v617
        %v619 = vand.u32 %v205, 4294901760
        %620 = vmatmul.f32.gmra.mxu0 %v619
        %v621 = vpop.f32.mrf.mxu0
        %v622 = vadd.f32 %v588, %v621
        %v623 = vand.u32 %v208, 4294901760
        %624 = vmatmul.f32.gmra.mxu0 %v623
        %v625 = vpop.f32.mrf.mxu0
        %v626 = vadd.f32 %v596, %v625
        %627 = vdwg.mxu0
        %628 = vmatpush.msra.mxu0 0.0
        %629 = vmatpush.msra.mxu0 0.0
        %630 = vmatpush.msra.mxu0 0.0
        %631 = vmatpush.msra.mxu0 0.0
        %632 = vmatpush.msra.mxu0 0.0
        %633 = vmatpush.msra.mxu0 0.0
        %634 = vmatpush.msra.mxu0 0.0
        %635 = vmatpush.msra.mxu0 0.0
        %636 = vmatpush.msra.mxu0 0.0
        %637 = vmatpush.msra.mxu0 0.0
        %638 = vmatpush.msra.mxu0 0.0
        %639 = vmatpush.msra.mxu0 0.0
        %640 = vmatpush.msra.mxu0 0.0
        %641 = vmatpush.msra.mxu0 0.0
        %642 = vmatpush.msra.mxu0 0.0
        %v643 = vand.u32 %v197, 4294901760
        %v644 = vsub.f32 %v197, %v643
        %645 = vmatpush.msra.mxu0 %v644
        %v646 = vand.u32 %v205, 4294901760
        %v647 = vsub.f32 %v205, %v646
        %648 = vmatmul.f32.gmra.mxu0 %v647
        %v649 = vpop.f32.mrf.mxu0
        %v650 = vadd.f32 %v622, %v649
        %v651 = vand.u32 %v208, 4294901760
        %v652 = vsub.f32 %v208, %v651
        %653 = vmatmul.f32.gmra.mxu0 %v652
        %v654 = vpop.f32.mrf.mxu0
        %v655 = vadd.f32 %v626, %v654
        %656 = vdwg.mxu0
        %657 = vmatpush.msra.mxu0 0.0
        %658 = vmatpush.msra.mxu0 0.0
        %659 = vmatpush.msra.mxu0 0.0
        %660 = vmatpush.msra.mxu0 0.0
        %661 = vmatpush.msra.mxu0 0.0
        %662 = vmatpush.msra.mxu0 0.0
        %663 = vmatpush.msra.mxu0 0.0
        %664 = vmatpush.msra.mxu0 0.0
        %665 = vmatpush.msra.mxu0 0.0
        %666 = vmatpush.msra.mxu0 0.0
        %667 = vmatpush.msra.mxu0 0.0
        %668 = vmatpush.msra.mxu0 0.0
        %669 = vmatpush.msra.mxu0 0.0
        %670 = vmatpush.msra.mxu0 0.0
        %671 = vmatpush.msra.mxu0 0.0
        %v672 = vand.u32 %v197, 4294901760
        %673 = vmatpush.msra.mxu0 %v672
        %v674 = vand.u32 %v205, 4294901760
        %v675 = vsub.f32 %v205, %v674
        %v676 = vand.u32 %v675, 4294901760
        %677 = vmatmul.f32.gmra.mxu0 %v676
        %v678 = vpop.f32.mrf.mxu0
        %v679 = vadd.f32 %v650, %v678
        %v680 = vand.u32 %v208, 4294901760
        %v681 = vsub.f32 %v208, %v680
        %v682 = vand.u32 %v681, 4294901760
        %683 = vmatmul.f32.gmra.mxu0 %v682
        %v684 = vpop.f32.mrf.mxu0
        %v685 = vadd.f32 %v655, %v684
        %686 = vdwg.mxu0
        %687 = vmatpush.msra.mxu0 0.0
        %688 = vmatpush.msra.mxu0 0.0
        %689 = vmatpush.msra.mxu0 0.0
        %690 = vmatpush.msra.mxu0 0.0
        %691 = vmatpush.msra.mxu0 0.0
        %692 = vmatpush.msra.mxu0 0.0
        %693 = vmatpush.msra.mxu0 0.0
        %694 = vmatpush.msra.mxu0 0.0
        %695 = vmatpush.msra.mxu0 0.0
        %696 = vmatpush.msra.mxu0 0.0
        %697 = vmatpush.msra.mxu0 0.0
        %698 = vmatpush.msra.mxu0 0.0
        %699 = vmatpush.msra.mxu0 0.0
        %700 = vmatpush.msra.mxu0 0.0
        %701 = vmatpush.msra.mxu0 0.0
        %v702 = vand.u32 %v197, 4294901760
        %v703 = vsub.f32 %v197, %v702
        %v704 = vand.u32 %v703, 4294901760
        %705 = vmatpush.msra.mxu0 %v704
        %v706 = vand.u32 %v205, 4294901760
        %707 = vmatmul.f32.gmra.mxu0 %v706
        %v708 = vpop.f32.mrf.mxu0
        %v709 = vadd.f32 %v679, %v708
        %v710 = vand.u32 %v208, 4294901760
        %711 = vmatmul.f32.gmra.mxu0 %v710
        %v712 = vpop.f32.mrf.mxu0
        %v713 = vadd.f32 %v685, %v712
        %714 = vdwg.mxu0
        %715 = vmatpush.msra.mxu0 0.0
        %716 = vmatpush.msra.mxu0 0.0
        %717 = vmatpush.msra.mxu0 0.0
        %718 = vmatpush.msra.mxu0 0.0
        %719 = vmatpush.msra.mxu0 0.0
        %720 = vmatpush.msra.mxu0 0.0
        %721 = vmatpush.msra.mxu0 0.0
        %722 = vmatpush.msra.mxu0 0.0
        %723 = vmatpush.msra.mxu0 0.0
        %724 = vmatpush.msra.mxu0 0.0
        %725 = vmatpush.msra.mxu0 0.0
        %726 = vmatpush.msra.mxu0 0.0
        %727 = vmatpush.msra.mxu0 0.0
        %728 = vmatpush.msra.mxu0 0.0
        %729 = vmatpush.msra.mxu0 0.0
        %v730 = vand.u32 %v197, 4294901760
        %731 = vmatpush.msra.mxu0 %v730
        %v732 = vand.u32 %v205, 4294901760
        %733 = vmatmul.f32.gmra.mxu0 %v732
        %v734 = vpop.f32.mrf.mxu0
        %v735 = vadd.f32 %v709, %v734
        %v736 = vand.u32 %v208, 4294901760
        %737 = vmatmul.f32.gmra.mxu0 %v736
        %v738 = vpop.f32.mrf.mxu0
        %v739 = vadd.f32 %v713, %v738
        %740 = vdwg.mxu0
        %741 = vmatpush.msra.mxu0 0.0
        %742 = vmatpush.msra.mxu0 0.0
        %743 = vmatpush.msra.mxu0 0.0
        %744 = vmatpush.msra.mxu0 0.0
        %745 = vmatpush.msra.mxu0 0.0
        %746 = vmatpush.msra.mxu0 0.0
        %747 = vmatpush.msra.mxu0 0.0
        %748 = vmatpush.msra.mxu0 0.0
        %749 = vmatpush.msra.mxu0 0.0
        %750 = vmatpush.msra.mxu0 0.0
        %751 = vmatpush.msra.mxu0 0.0
        %752 = vmatpush.msra.mxu0 0.0
        %753 = vmatpush.msra.mxu0 0.0
        %754 = vmatpush.msra.mxu0 0.0
        %755 = vmatpush.msra.mxu0 0.0
        %v756 = vand.u32 %v198, 4294901760
        %757 = vmatpush.msra.mxu0 %v756
        %v758 = vand.u32 %v205, 4294901760
        %v759 = vsub.f32 %v205, %v758
        %v760 = vand.u32 %v759, 4294901760
        %v761 = vsub.f32 %v759, %v760
        %v762 = vand.u32 %v761, 4294901760
        %763 = vmatmul.f32.gmra.mxu0 %v762
        %v764 = vpop.f32.mrf.mxu0
        %v765 = vadd.f32 0.0, %v764
        %v766 = vand.u32 %v208, 4294901760
        %v767 = vsub.f32 %v208, %v766
        %v768 = vand.u32 %v767, 4294901760
        %v769 = vsub.f32 %v767, %v768
        %v770 = vand.u32 %v769, 4294901760
        %771 = vmatmul.f32.gmra.mxu0 %v770
        %v772 = vpop.f32.mrf.mxu0
        %v773 = vadd.f32 0.0, %v772
        %774 = vdwg.mxu0
        %775 = vmatpush.msra.mxu0 0.0
        %776 = vmatpush.msra.mxu0 0.0
        %777 = vmatpush.msra.mxu0 0.0
        %778 = vmatpush.msra.mxu0 0.0
        %779 = vmatpush.msra.mxu0 0.0
        %780 = vmatpush.msra.mxu0 0.0
        %781 = vmatpush.msra.mxu0 0.0
        %782 = vmatpush.msra.mxu0 0.0
        %783 = vmatpush.msra.mxu0 0.0
        %784 = vmatpush.msra.mxu0 0.0
        %785 = vmatpush.msra.mxu0 0.0
        %786 = vmatpush.msra.mxu0 0.0
        %787 = vmatpush.msra.mxu0 0.0
        %788 = vmatpush.msra.mxu0 0.0
        %789 = vmatpush.msra.mxu0 0.0
        %v790 = vand.u32 %v198, 4294901760
        %v791 = vsub.f32 %v198, %v790
        %v792 = vand.u32 %v791, 4294901760
        %v793 = vsub.f32 %v791, %v792
        %v794 = vand.u32 %v793, 4294901760
        %795 = vmatpush.msra.mxu0 %v794
        %v796 = vand.u32 %v205, 4294901760
        %797 = vmatmul.f32.gmra.mxu0 %v796
        %v798 = vpop.f32.mrf.mxu0
        %v799 = vadd.f32 %v765, %v798
        %v800 = vand.u32 %v208, 4294901760
        %801 = vmatmul.f32.gmra.mxu0 %v800
        %v802 = vpop.f32.mrf.mxu0
        %v803 = vadd.f32 %v773, %v802
        %804 = vdwg.mxu0
        %805 = vmatpush.msra.mxu0 0.0
        %806 = vmatpush.msra.mxu0 0.0
        %807 = vmatpush.msra.mxu0 0.0
        %808 = vmatpush.msra.mxu0 0.0
        %809 = vmatpush.msra.mxu0 0.0
        %810 = vmatpush.msra.mxu0 0.0
        %811 = vmatpush.msra.mxu0 0.0
        %812 = vmatpush.msra.mxu0 0.0
        %813 = vmatpush.msra.mxu0 0.0
        %814 = vmatpush.msra.mxu0 0.0
        %815 = vmatpush.msra.mxu0 0.0
        %816 = vmatpush.msra.mxu0 0.0
        %817 = vmatpush.msra.mxu0 0.0
        %818 = vmatpush.msra.mxu0 0.0
        %819 = vmatpush.msra.mxu0 0.0
        %v820 = vand.u32 %v198, 4294901760
        %v821 = vsub.f32 %v198, %v820
        %822 = vmatpush.msra.mxu0 %v821
        %v823 = vand.u32 %v205, 4294901760
        %v824 = vsub.f32 %v205, %v823
        %825 = vmatmul.f32.gmra.mxu0 %v824
        %v826 = vpop.f32.mrf.mxu0
        %v827 = vadd.f32 %v799, %v826
        %v828 = vand.u32 %v208, 4294901760
        %v829 = vsub.f32 %v208, %v828
        %830 = vmatmul.f32.gmra.mxu0 %v829
        %v831 = vpop.f32.mrf.mxu0
        %v832 = vadd.f32 %v803, %v831
        %833 = vdwg.mxu0
        %834 = vmatpush.msra.mxu0 0.0
        %835 = vmatpush.msra.mxu0 0.0
        %836 = vmatpush.msra.mxu0 0.0
        %837 = vmatpush.msra.mxu0 0.0
        %838 = vmatpush.msra.mxu0 0.0
        %839 = vmatpush.msra.mxu0 0.0
        %840 = vmatpush.msra.mxu0 0.0
        %841 = vmatpush.msra.mxu0 0.0
        %842 = vmatpush.msra.mxu0 0.0
        %843 = vmatpush.msra.mxu0 0.0
        %844 = vmatpush.msra.mxu0 0.0
        %845 = vmatpush.msra.mxu0 0.0
        %846 = vmatpush.msra.mxu0 0.0
        %847 = vmatpush.msra.mxu0 0.0
        %848 = vmatpush.msra.mxu0 0.0
        %v849 = vand.u32 %v198, 4294901760
        %850 = vmatpush.msra.mxu0 %v849
        %v851 = vand.u32 %v205, 4294901760
        %v852 = vsub.f32 %v205, %v851
        %v853 = vand.u32 %v852, 4294901760
        %854 = vmatmul.f32.gmra.mxu0 %v853
        %v855 = vpop.f32.mrf.mxu0
        %v856 = vadd.f32 %v827, %v855
        %v857 = vand.u32 %v208, 4294901760
        %v858 = vsub.f32 %v208, %v857
        %v859 = vand.u32 %v858, 4294901760
        %860 = vmatmul.f32.gmra.mxu0 %v859
        %v861 = vpop.f32.mrf.mxu0
        %v862 = vadd.f32 %v832, %v861
        %863 = vdwg.mxu0
        %864 = vmatpush.msra.mxu0 0.0
        %865 = vmatpush.msra.mxu0 0.0
        %866 = vmatpush.msra.mxu0 0.0
        %867 = vmatpush.msra.mxu0 0.0
        %868 = vmatpush.msra.mxu0 0.0
        %869 = vmatpush.msra.mxu0 0.0
        %870 = vmatpush.msra.mxu0 0.0
        %871 = vmatpush.msra.mxu0 0.0
        %872 = vmatpush.msra.mxu0 0.0
        %873 = vmatpush.msra.mxu0 0.0
        %874 = vmatpush.msra.mxu0 0.0
        %875 = vmatpush.msra.mxu0 0.0
        %876 = vmatpush.msra.mxu0 0.0
        %877 = vmatpush.msra.mxu0 0.0
        %878 = vmatpush.msra.mxu0 0.0
        %v879 = vand.u32 %v198, 4294901760
        %v880 = vsub.f32 %v198, %v879
        %v881 = vand.u32 %v880, 4294901760
        %882 = vmatpush.msra.mxu0 %v881
        %v883 = vand.u32 %v205, 4294901760
        %884 = vmatmul.f32.gmra.mxu0 %v883
        %v885 = vpop.f32.mrf.mxu0
        %v886 = vadd.f32 %v856, %v885
        %v887 = vand.u32 %v208, 4294901760
        %888 = vmatmul.f32.gmra.mxu0 %v887
        %v889 = vpop.f32.mrf.mxu0
        %v890 = vadd.f32 %v862, %v889
        %891 = vdwg.mxu0
        %892 = vmatpush.msra.mxu0 0.0
        %893 = vmatpush.msra.mxu0 0.0
        %894 = vmatpush.msra.mxu0 0.0
        %895 = vmatpush.msra.mxu0 0.0
        %896 = vmatpush.msra.mxu0 0.0
        %897 = vmatpush.msra.mxu0 0.0
        %898 = vmatpush.msra.mxu0 0.0
        %899 = vmatpush.msra.mxu0 0.0
        %900 = vmatpush.msra.mxu0 0.0
        %901 = vmatpush.msra.mxu0 0.0
        %902 = vmatpush.msra.mxu0 0.0
        %903 = vmatpush.msra.mxu0 0.0
        %904 = vmatpush.msra.mxu0 0.0
        %905 = vmatpush.msra.mxu0 0.0
        %906 = vmatpush.msra.mxu0 0.0
        %v907 = vand.u32 %v198, 4294901760
        %908 = vmatpush.msra.mxu0 %v907
        %v909 = vand.u32 %v205, 4294901760
        %910 = vmatmul.f32.gmra.mxu0 %v909
        %v911 = vpop.f32.mrf.mxu0
        %v912 = vadd.f32 %v886, %v911
        %v913 = vand.u32 %v208, 4294901760
        %914 = vmatmul.f32.gmra.mxu0 %v913
        %v915 = vpop.f32.mrf.mxu0
        %v916 = vadd.f32 %v890, %v915
        %917 = vdwg.mxu0
        %vm918 = vcmask 130048
        %v920 = vsel %vm918, %v381, 0
        %v923 = vsel %vm918, %v385, 0
        %v926 = vsel %vm918, %v558, 0
        %v929 = vsel %vm918, %v562, 0
        %v932 = vsel %vm918, %v735, 0
        %v935 = vsel %vm918, %v739, 0
        %v938 = vsel %vm918, %v912, 0
        %v941 = vsel %vm918, %v916, 0
        %943 = vmatpush.msra.mxu0 0.0
        %944 = vmatpush.msra.mxu0 0.0
        %945 = vmatpush.msra.mxu0 0.0
        %946 = vmatpush.msra.mxu0 0.0
        %947 = vmatpush.msra.mxu0 0.0
        %948 = vmatpush.msra.mxu0 0.0
        %949 = vmatpush.msra.mxu0 0.0
        %950 = vmatpush.msra.mxu0 0.0
        %951 = vmatpush.msra.mxu0 0.0
        %952 = vmatpush.msra.mxu0 0.0
        %953 = vmatpush.msra.mxu0 0.0
        %954 = vmatpush.msra.mxu0 0.0
        %955 = vmatpush.msra.mxu0 0.0
        %956 = vmatpush.msra.mxu0 0.0
        %v957 = vand.u32 %v202, 4294901760
        %958 = vmatpush.msra.mxu0 %v957
        %v959 = vand.u32 %v201, 4294901760
        %960 = vmatpush.msra.mxu0 %v959
        %v961 = vand.u32 %v920, 4294901760
        %v962 = vsub.f32 %v920, %v961
        %v963 = vand.u32 %v962, 4294901760
        %v964 = vsub.f32 %v962, %v963
        %v965 = vand.u32 %v964, 4294901760
        %966 = vmatmul.f32.gmra.mxu0 %v965
        %v967 = vpop.f32.mrf.mxu0
        %v968 = vadd.f32 0.0, %v967
        %v969 = vand.u32 %v923, 4294901760
        %v970 = vsub.f32 %v923, %v969
        %v971 = vand.u32 %v970, 4294901760
        %v972 = vsub.f32 %v970, %v971
        %v973 = vand.u32 %v972, 4294901760
        %974 = vmatmul.f32.gmra.mxu0 %v973
        %v975 = vpop.f32.mrf.mxu0
        %v976 = vadd.f32 0.0, %v975
        %v977 = vand.u32 %v926, 4294901760
        %v978 = vsub.f32 %v926, %v977
        %v979 = vand.u32 %v978, 4294901760
        %v980 = vsub.f32 %v978, %v979
        %v981 = vand.u32 %v980, 4294901760
        %982 = vmatmul.f32.gmra.mxu0 %v981
        %v983 = vpop.f32.mrf.mxu0
        %v984 = vadd.f32 0.0, %v983
        %v985 = vand.u32 %v929, 4294901760
        %v986 = vsub.f32 %v929, %v985
        %v987 = vand.u32 %v986, 4294901760
        %v988 = vsub.f32 %v986, %v987
        %v989 = vand.u32 %v988, 4294901760
        %990 = vmatmul.f32.gmra.mxu0 %v989
        %v991 = vpop.f32.mrf.mxu0
        %v992 = vadd.f32 0.0, %v991
        %v993 = vand.u32 %v932, 4294901760
        %v994 = vsub.f32 %v932, %v993
        %v995 = vand.u32 %v994, 4294901760
        %v996 = vsub.f32 %v994, %v995
        %v997 = vand.u32 %v996, 4294901760
        %998 = vmatmul.f32.gmra.mxu0 %v997
        %v999 = vpop.f32.mrf.mxu0
        %v1000 = vadd.f32 0.0, %v999
        %v1001 = vand.u32 %v935, 4294901760
        %v1002 = vsub.f32 %v935, %v1001
        %v1003 = vand.u32 %v1002, 4294901760
        %v1004 = vsub.f32 %v1002, %v1003
        %v1005 = vand.u32 %v1004, 4294901760
        %1006 = vmatmul.f32.gmra.mxu0 %v1005
        %v1007 = vpop.f32.mrf.mxu0
        %v1008 = vadd.f32 0.0, %v1007
        %v1009 = vand.u32 %v938, 4294901760
        %v1010 = vsub.f32 %v938, %v1009
        %v1011 = vand.u32 %v1010, 4294901760
        %v1012 = vsub.f32 %v1010, %v1011
        %v1013 = vand.u32 %v1012, 4294901760
        %1014 = vmatmul.f32.gmra.mxu0 %v1013
        %v1015 = vpop.f32.mrf.mxu0
        %v1016 = vadd.f32 0.0, %v1015
        %v1017 = vand.u32 %v941, 4294901760
        %v1018 = vsub.f32 %v941, %v1017
        %v1019 = vand.u32 %v1018, 4294901760
        %v1020 = vsub.f32 %v1018, %v1019
        %v1021 = vand.u32 %v1020, 4294901760
        %1022 = vmatmul.f32.gmra.mxu0 %v1021
        %v1023 = vpop.f32.mrf.mxu0
        %v1024 = vadd.f32 0.0, %v1023
        %1025 = vdwg.mxu0
        %1026 = vmatpush.msra.mxu0 0.0
        %1027 = vmatpush.msra.mxu0 0.0
        %1028 = vmatpush.msra.mxu0 0.0
        %1029 = vmatpush.msra.mxu0 0.0
        %1030 = vmatpush.msra.mxu0 0.0
        %1031 = vmatpush.msra.mxu0 0.0
        %1032 = vmatpush.msra.mxu0 0.0
        %1033 = vmatpush.msra.mxu0 0.0
        %1034 = vmatpush.msra.mxu0 0.0
        %1035 = vmatpush.msra.mxu0 0.0
        %1036 = vmatpush.msra.mxu0 0.0
        %1037 = vmatpush.msra.mxu0 0.0
        %1038 = vmatpush.msra.mxu0 0.0
        %1039 = vmatpush.msra.mxu0 0.0
        %v1040 = vand.u32 %v202, 4294901760
        %v1041 = vsub.f32 %v202, %v1040
        %v1042 = vand.u32 %v1041, 4294901760
        %v1043 = vsub.f32 %v1041, %v1042
        %v1044 = vand.u32 %v1043, 4294901760
        %1045 = vmatpush.msra.mxu0 %v1044
        %v1046 = vand.u32 %v201, 4294901760
        %v1047 = vsub.f32 %v201, %v1046
        %v1048 = vand.u32 %v1047, 4294901760
        %v1049 = vsub.f32 %v1047, %v1048
        %v1050 = vand.u32 %v1049, 4294901760
        %1051 = vmatpush.msra.mxu0 %v1050
        %v1052 = vand.u32 %v920, 4294901760
        %1053 = vmatmul.f32.gmra.mxu0 %v1052
        %v1054 = vpop.f32.mrf.mxu0
        %v1055 = vadd.f32 %v968, %v1054
        %v1056 = vand.u32 %v923, 4294901760
        %1057 = vmatmul.f32.gmra.mxu0 %v1056
        %v1058 = vpop.f32.mrf.mxu0
        %v1059 = vadd.f32 %v976, %v1058
        %v1060 = vand.u32 %v926, 4294901760
        %1061 = vmatmul.f32.gmra.mxu0 %v1060
        %v1062 = vpop.f32.mrf.mxu0
        %v1063 = vadd.f32 %v984, %v1062
        %v1064 = vand.u32 %v929, 4294901760
        %1065 = vmatmul.f32.gmra.mxu0 %v1064
        %v1066 = vpop.f32.mrf.mxu0
        %v1067 = vadd.f32 %v992, %v1066
        %v1068 = vand.u32 %v932, 4294901760
        %1069 = vmatmul.f32.gmra.mxu0 %v1068
        %v1070 = vpop.f32.mrf.mxu0
        %v1071 = vadd.f32 %v1000, %v1070
        %v1072 = vand.u32 %v935, 4294901760
        %1073 = vmatmul.f32.gmra.mxu0 %v1072
        %v1074 = vpop.f32.mrf.mxu0
        %v1075 = vadd.f32 %v1008, %v1074
        %v1076 = vand.u32 %v938, 4294901760
        %1077 = vmatmul.f32.gmra.mxu0 %v1076
        %v1078 = vpop.f32.mrf.mxu0
        %v1079 = vadd.f32 %v1016, %v1078
        %v1080 = vand.u32 %v941, 4294901760
        %1081 = vmatmul.f32.gmra.mxu0 %v1080
        %v1082 = vpop.f32.mrf.mxu0
        %v1083 = vadd.f32 %v1024, %v1082
        %1084 = vdwg.mxu0
        %1085 = vmatpush.msra.mxu0 0.0
        %1086 = vmatpush.msra.mxu0 0.0
        %1087 = vmatpush.msra.mxu0 0.0
        %1088 = vmatpush.msra.mxu0 0.0
        %1089 = vmatpush.msra.mxu0 0.0
        %1090 = vmatpush.msra.mxu0 0.0
        %1091 = vmatpush.msra.mxu0 0.0
        %1092 = vmatpush.msra.mxu0 0.0
        %1093 = vmatpush.msra.mxu0 0.0
        %1094 = vmatpush.msra.mxu0 0.0
        %1095 = vmatpush.msra.mxu0 0.0
        %1096 = vmatpush.msra.mxu0 0.0
        %1097 = vmatpush.msra.mxu0 0.0
        %1098 = vmatpush.msra.mxu0 0.0
        %v1099 = vand.u32 %v202, 4294901760
        %v1100 = vsub.f32 %v202, %v1099
        %1101 = vmatpush.msra.mxu0 %v1100
        %v1102 = vand.u32 %v201, 4294901760
        %v1103 = vsub.f32 %v201, %v1102
        %1104 = vmatpush.msra.mxu0 %v1103
        %v1105 = vand.u32 %v920, 4294901760
        %v1106 = vsub.f32 %v920, %v1105
        %1107 = vmatmul.f32.gmra.mxu0 %v1106
        %v1108 = vpop.f32.mrf.mxu0
        %v1109 = vadd.f32 %v1055, %v1108
        %v1110 = vand.u32 %v923, 4294901760
        %v1111 = vsub.f32 %v923, %v1110
        %1112 = vmatmul.f32.gmra.mxu0 %v1111
        %v1113 = vpop.f32.mrf.mxu0
        %v1114 = vadd.f32 %v1059, %v1113
        %v1115 = vand.u32 %v926, 4294901760
        %v1116 = vsub.f32 %v926, %v1115
        %1117 = vmatmul.f32.gmra.mxu0 %v1116
        %v1118 = vpop.f32.mrf.mxu0
        %v1119 = vadd.f32 %v1063, %v1118
        %v1120 = vand.u32 %v929, 4294901760
        %v1121 = vsub.f32 %v929, %v1120
        %1122 = vmatmul.f32.gmra.mxu0 %v1121
        %v1123 = vpop.f32.mrf.mxu0
        %v1124 = vadd.f32 %v1067, %v1123
        %v1125 = vand.u32 %v932, 4294901760
        %v1126 = vsub.f32 %v932, %v1125
        %1127 = vmatmul.f32.gmra.mxu0 %v1126
        %v1128 = vpop.f32.mrf.mxu0
        %v1129 = vadd.f32 %v1071, %v1128
        %v1130 = vand.u32 %v935, 4294901760
        %v1131 = vsub.f32 %v935, %v1130
        %1132 = vmatmul.f32.gmra.mxu0 %v1131
        %v1133 = vpop.f32.mrf.mxu0
        %v1134 = vadd.f32 %v1075, %v1133
        %v1135 = vand.u32 %v938, 4294901760
        %v1136 = vsub.f32 %v938, %v1135
        %1137 = vmatmul.f32.gmra.mxu0 %v1136
        %v1138 = vpop.f32.mrf.mxu0
        %v1139 = vadd.f32 %v1079, %v1138
        %v1140 = vand.u32 %v941, 4294901760
        %v1141 = vsub.f32 %v941, %v1140
        %1142 = vmatmul.f32.gmra.mxu0 %v1141
        %v1143 = vpop.f32.mrf.mxu0
        %v1144 = vadd.f32 %v1083, %v1143
        %1145 = vdwg.mxu0
        %1146 = vmatpush.msra.mxu0 0.0
        %1147 = vmatpush.msra.mxu0 0.0
        %1148 = vmatpush.msra.mxu0 0.0
        %1149 = vmatpush.msra.mxu0 0.0
        %1150 = vmatpush.msra.mxu0 0.0
        %1151 = vmatpush.msra.mxu0 0.0
        %1152 = vmatpush.msra.mxu0 0.0
        %1153 = vmatpush.msra.mxu0 0.0
        %1154 = vmatpush.msra.mxu0 0.0
        %1155 = vmatpush.msra.mxu0 0.0
        %1156 = vmatpush.msra.mxu0 0.0
        %1157 = vmatpush.msra.mxu0 0.0
        %1158 = vmatpush.msra.mxu0 0.0
        %1159 = vmatpush.msra.mxu0 0.0
        %v1160 = vand.u32 %v202, 4294901760
        %1161 = vmatpush.msra.mxu0 %v1160
        %v1162 = vand.u32 %v201, 4294901760
        %1163 = vmatpush.msra.mxu0 %v1162
        %v1164 = vand.u32 %v920, 4294901760
        %v1165 = vsub.f32 %v920, %v1164
        %v1166 = vand.u32 %v1165, 4294901760
        %1167 = vmatmul.f32.gmra.mxu0 %v1166
        %v1168 = vpop.f32.mrf.mxu0
        %v1169 = vadd.f32 %v1109, %v1168
        %v1170 = vand.u32 %v923, 4294901760
        %v1171 = vsub.f32 %v923, %v1170
        %v1172 = vand.u32 %v1171, 4294901760
        %1173 = vmatmul.f32.gmra.mxu0 %v1172
        %v1174 = vpop.f32.mrf.mxu0
        %v1175 = vadd.f32 %v1114, %v1174
        %v1176 = vand.u32 %v926, 4294901760
        %v1177 = vsub.f32 %v926, %v1176
        %v1178 = vand.u32 %v1177, 4294901760
        %1179 = vmatmul.f32.gmra.mxu0 %v1178
        %v1180 = vpop.f32.mrf.mxu0
        %v1181 = vadd.f32 %v1119, %v1180
        %v1182 = vand.u32 %v929, 4294901760
        %v1183 = vsub.f32 %v929, %v1182
        %v1184 = vand.u32 %v1183, 4294901760
        %1185 = vmatmul.f32.gmra.mxu0 %v1184
        %v1186 = vpop.f32.mrf.mxu0
        %v1187 = vadd.f32 %v1124, %v1186
        %v1188 = vand.u32 %v932, 4294901760
        %v1189 = vsub.f32 %v932, %v1188
        %v1190 = vand.u32 %v1189, 4294901760
        %1191 = vmatmul.f32.gmra.mxu0 %v1190
        %v1192 = vpop.f32.mrf.mxu0
        %v1193 = vadd.f32 %v1129, %v1192
        %v1194 = vand.u32 %v935, 4294901760
        %v1195 = vsub.f32 %v935, %v1194
        %v1196 = vand.u32 %v1195, 4294901760
        %1197 = vmatmul.f32.gmra.mxu0 %v1196
        %v1198 = vpop.f32.mrf.mxu0
        %v1199 = vadd.f32 %v1134, %v1198
        %v1200 = vand.u32 %v938, 4294901760
        %v1201 = vsub.f32 %v938, %v1200
        %v1202 = vand.u32 %v1201, 4294901760
        %1203 = vmatmul.f32.gmra.mxu0 %v1202
        %v1204 = vpop.f32.mrf.mxu0
        %v1205 = vadd.f32 %v1139, %v1204
        %v1206 = vand.u32 %v941, 4294901760
        %v1207 = vsub.f32 %v941, %v1206
        %v1208 = vand.u32 %v1207, 4294901760
        %1209 = vmatmul.f32.gmra.mxu0 %v1208
        %v1210 = vpop.f32.mrf.mxu0
        %v1211 = vadd.f32 %v1144, %v1210
        %1212 = vdwg.mxu0
        %1213 = vmatpush.msra.mxu0 0.0
        %1214 = vmatpush.msra.mxu0 0.0
        %1215 = vmatpush.msra.mxu0 0.0
        %1216 = vmatpush.msra.mxu0 0.0
        %1217 = vmatpush.msra.mxu0 0.0
        %1218 = vmatpush.msra.mxu0 0.0
        %1219 = vmatpush.msra.mxu0 0.0
        %1220 = vmatpush.msra.mxu0 0.0
        %1221 = vmatpush.msra.mxu0 0.0
        %1222 = vmatpush.msra.mxu0 0.0
        %1223 = vmatpush.msra.mxu0 0.0
        %1224 = vmatpush.msra.mxu0 0.0
        %1225 = vmatpush.msra.mxu0 0.0
        %1226 = vmatpush.msra.mxu0 0.0
        %v1227 = vand.u32 %v202, 4294901760
        %v1228 = vsub.f32 %v202, %v1227
        %v1229 = vand.u32 %v1228, 4294901760
        %1230 = vmatpush.msra.mxu0 %v1229
        %v1231 = vand.u32 %v201, 4294901760
        %v1232 = vsub.f32 %v201, %v1231
        %v1233 = vand.u32 %v1232, 4294901760
        %1234 = vmatpush.msra.mxu0 %v1233
        %v1235 = vand.u32 %v920, 4294901760
        %1236 = vmatmul.f32.gmra.mxu0 %v1235
        %v1237 = vpop.f32.mrf.mxu0
        %v1238 = vadd.f32 %v1169, %v1237
        %v1239 = vand.u32 %v923, 4294901760
        %1240 = vmatmul.f32.gmra.mxu0 %v1239
        %v1241 = vpop.f32.mrf.mxu0
        %v1242 = vadd.f32 %v1175, %v1241
        %v1243 = vand.u32 %v926, 4294901760
        %1244 = vmatmul.f32.gmra.mxu0 %v1243
        %v1245 = vpop.f32.mrf.mxu0
        %v1246 = vadd.f32 %v1181, %v1245
        %v1247 = vand.u32 %v929, 4294901760
        %1248 = vmatmul.f32.gmra.mxu0 %v1247
        %v1249 = vpop.f32.mrf.mxu0
        %v1250 = vadd.f32 %v1187, %v1249
        %v1251 = vand.u32 %v932, 4294901760
        %1252 = vmatmul.f32.gmra.mxu0 %v1251
        %v1253 = vpop.f32.mrf.mxu0
        %v1254 = vadd.f32 %v1193, %v1253
        %v1255 = vand.u32 %v935, 4294901760
        %1256 = vmatmul.f32.gmra.mxu0 %v1255
        %v1257 = vpop.f32.mrf.mxu0
        %v1258 = vadd.f32 %v1199, %v1257
        %v1259 = vand.u32 %v938, 4294901760
        %1260 = vmatmul.f32.gmra.mxu0 %v1259
        %v1261 = vpop.f32.mrf.mxu0
        %v1262 = vadd.f32 %v1205, %v1261
        %v1263 = vand.u32 %v941, 4294901760
        %1264 = vmatmul.f32.gmra.mxu0 %v1263
        %v1265 = vpop.f32.mrf.mxu0
        %v1266 = vadd.f32 %v1211, %v1265
        %1267 = vdwg.mxu0
        %1268 = vmatpush.msra.mxu0 0.0
        %1269 = vmatpush.msra.mxu0 0.0
        %1270 = vmatpush.msra.mxu0 0.0
        %1271 = vmatpush.msra.mxu0 0.0
        %1272 = vmatpush.msra.mxu0 0.0
        %1273 = vmatpush.msra.mxu0 0.0
        %1274 = vmatpush.msra.mxu0 0.0
        %1275 = vmatpush.msra.mxu0 0.0
        %1276 = vmatpush.msra.mxu0 0.0
        %1277 = vmatpush.msra.mxu0 0.0
        %1278 = vmatpush.msra.mxu0 0.0
        %1279 = vmatpush.msra.mxu0 0.0
        %1280 = vmatpush.msra.mxu0 0.0
        %1281 = vmatpush.msra.mxu0 0.0
        %v1282 = vand.u32 %v202, 4294901760
        %1283 = vmatpush.msra.mxu0 %v1282
        %v1284 = vand.u32 %v201, 4294901760
        %1285 = vmatpush.msra.mxu0 %v1284
        %v1286 = vand.u32 %v920, 4294901760
        %1287 = vmatmul.f32.gmra.mxu0 %v1286
        %v1288 = vpop.f32.mrf.mxu0
        %v1289 = vadd.f32 %v1238, %v1288
        %v1290 = vand.u32 %v923, 4294901760
        %1291 = vmatmul.f32.gmra.mxu0 %v1290
        %v1292 = vpop.f32.mrf.mxu0
        %v1293 = vadd.f32 %v1242, %v1292
        %v1294 = vand.u32 %v926, 4294901760
        %1295 = vmatmul.f32.gmra.mxu0 %v1294
        %v1296 = vpop.f32.mrf.mxu0
        %v1297 = vadd.f32 %v1246, %v1296
        %v1298 = vand.u32 %v929, 4294901760
        %1299 = vmatmul.f32.gmra.mxu0 %v1298
        %v1300 = vpop.f32.mrf.mxu0
        %v1301 = vadd.f32 %v1250, %v1300
        %v1302 = vand.u32 %v932, 4294901760
        %1303 = vmatmul.f32.gmra.mxu0 %v1302
        %v1304 = vpop.f32.mrf.mxu0
        %v1305 = vadd.f32 %v1254, %v1304
        %v1306 = vand.u32 %v935, 4294901760
        %1307 = vmatmul.f32.gmra.mxu0 %v1306
        %v1308 = vpop.f32.mrf.mxu0
        %v1309 = vadd.f32 %v1258, %v1308
        %v1310 = vand.u32 %v938, 4294901760
        %1311 = vmatmul.f32.gmra.mxu0 %v1310
        %v1312 = vpop.f32.mrf.mxu0
        %v1313 = vadd.f32 %v1262, %v1312
        %v1314 = vand.u32 %v941, 4294901760
        %1315 = vmatmul.f32.gmra.mxu0 %v1314
        %v1316 = vpop.f32.mrf.mxu0
        %v1317 = vadd.f32 %v1266, %v1316
        %1318 = vdwg.mxu0
        %vm1319 = vcmask 261120
        %1320 = vst.msk [vmem:[%s193] sm:$0xff] %vm1319, %v1289
        %1321 = vst.msk [vmem:[%s193 + $0x8] sm:$0xff] %vm1319, %v1293
        %1322 = vst.msk [vmem:[%s193 + $0x10] sm:$0xff] %vm1319, %v1297
        %1323 = vst.msk [vmem:[%s193 + $0x18] sm:$0xff] %vm1319, %v1301
        %1324 = vst.msk [vmem:[%s193 + $0x20] sm:$0xff] %vm1319, %v1305
        %1325 = vst.msk [vmem:[%s193 + $0x28] sm:$0xff] %vm1319, %v1309
        %1326 = vst.msk [vmem:[%s193 + $0x30] sm:$0xff] %vm1319, %v1313
        %1327 = vst.msk [vmem:[%s193 + $0x38] sm:$0xff] %vm1319, %v1317
        %s1328 = smul.u32 8, %s17
        %p1329 = scmp.lt.s32.totalorder %s1328, 15
        %s1330 = scalar_select %p1329, %s1328, 15
        %s1331 = smul.addr %s1330, 8
        %s1332 = scalar_lea.vmem %s3, %s1331
        // Predicated region
        $region37: #{tpu_custom_call.1} parent=31 // pred_check
          %p1333 = pneg %p103
        $region38: #{tpu_custom_call.1} parent=31 // pred_check_branch
          %1335 = sbr.rel (%p1333) target = $region40
        $region39: #{tpu_custom_call.1} parent=31 // pred_region
          %s1336 = smul.u32 8, %s17
        $region40: #{tpu_custom_call.1} parent=31 // pred_fallthru
          _
      $region32: #{tpu_custom_call.1} parent=5 // pred_fallthru
        _
      %p1337 = scmp.le.s32.totalorder 2, %s12
      // Predicated region
      $region41: #{tpu_custom_call.1} parent=5 // pred_check
        %p1338 = pneg %p1337
      $region42: #{tpu_custom_call.1} parent=5 // pred_check_branch
        %1340 = sbr.rel (%p1338) target = $region44
      $region43: #{tpu_custom_call.1} parent=5 // pred_region
        %s1341 = ssub.s32 %s12, 2
        // Predicated region
        $region45: #{tpu_custom_call.1} parent=43 // pred_check
          %p1342 = pneg %p109
        $region46: #{tpu_custom_call.1} parent=43 // pred_check_branch
          %1344 = sbr.rel (%p1342) target = $region48
        $region47: #{tpu_custom_call.1} parent=43 // pred_region
          %s1345 = smul.u32 8, %s18
          %p1346 = scmp.lt.s32.totalorder %s1345, 15
          %s1347 = scalar_select %p1346, %s1345, 15
          %s1348 = smul.addr %s1347, 8
          %s1349 = scalar_lea.vmem %s3, %s1348
        $region48: #{tpu_custom_call.1} parent=43 // pred_fallthru
          _
      $region44: #{tpu_custom_call.1} parent=5 // pred_fallthru
        _
    $region6: #{tpu_custom_call.1} parent=1 // loop_footer
      %s16 = sadd.s32 1, %s12
    $region7: #{tpu_custom_call.1} parent=1 // loop_footer_branch
      %11 = sbr.rel target = $region3
    $region8: #{tpu_custom_call.1} parent=1 // loop_exit
      _
    %1350 = vsyncpa [#allocation3], 1
    %s1351 = scalar_lea.sflag [#allocation3], 1
    %1352 = vsyncpa %s1351, 1

</llo_original>
